<compile_context>
chip_gen: v5e
topology: v5e:2x2
jax: 0.10.0
libtpu: 0.0.40
codegen_flags: <defaults>
</compile_context>

<pallas_src>
import jax
import jax.numpy as jnp
from jax.experimental import pallas as pl
from jax.experimental.pallas import tpu as pltpu

_LANES = 128
_SUBLANES = 8
_ROW_ALIGN = 16            # covers f32 (8,128) and bf16 (16,128) tile constraints
_MAX_BLOCK_ROWS = 2048     # 1 MiB per f32 stream buffer


# ---------------------------------------------------------------------------
# Guarded hardware queries (conservative fallbacks if the API shape differs)
# ---------------------------------------------------------------------------
def _vmem_limit_bytes():
    """~half of physical VMEM, capped at 64 MiB: 64 MiB on v5e/v6e, 32 MiB on v7x."""
    phys = 64 * 1024 * 1024            # conservative fallback (v7x physical size)
    try:
        phys = int(pltpu.get_tpu_info().vmem_capacity_bytes)
    except Exception:
        pass
    return int(min(max(phys // 2, 16 * 1024 * 1024), 64 * 1024 * 1024))


def _num_tensorcores():
    """Per-chip TensorCore count (2 on v7x/megacore, 1 on v5e/v6e). Default 1."""
    try:
        info = pltpu.get_tpu_info()
    except Exception:
        return 1
    for name in ("num_cores", "core_count", "num_tensorcores", "tensorcore_count",
                 "cores_per_chip", "num_cores_per_chip"):
        v = getattr(info, name, None)
        if v is None:
            continue
        try:
            v = int(v)
        except (TypeError, ValueError):
            continue
        if 1 <= v <= 8:
            return v
    return 1


# ---------------------------------------------------------------------------
# Fused streaming kernel
# ---------------------------------------------------------------------------
def _make_fused_kernel(iv_specs, sub, n_streams):
    """iv_specs[k] is None (lower/upper streamed as arrays) or (c_lo, c_hi)
    compile-time floats meaning lower/upper = pred + c * uncertainty."""

    def kernel(*refs):
        in_refs = refs[:n_streams]
        out_ref = refs[n_streams]

        i = pl.program_id(1)

        @pl.when(i == 0)
        def _init():
            out_ref[...] = jnp.zeros_like(out_ref)

        # Native-dtype loads; cast to f32 on the VPU (free vs. HBM bytes).
        p = in_refs[0][...].astype(jnp.float32)
        t = in_refs[1][...].astype(jnp.float32)
        u = in_refs[2][...].astype(jnp.float32)
        e = jnp.abs(p - t)

        def vsum(x):
            # (block_rows,128) -> (8,128) partial via VALU adds only; the
            # reshape splits the sublane axis along native (8,128) tiles.
            return jnp.sum(x.reshape(sub, _SUBLANES, _LANES), axis=0)

        out_ref[0] += vsum(e)
        out_ref[1] += vsum(e * e)
        out_ref[2] += vsum(u)
        out_ref[3] += vsum(u * u)
        out_ref[4] += vsum(e * u)

        s = 3
        for k, spec in enumerate(iv_specs):
            if spec is None:
                lo = in_refs[s][...].astype(jnp.float32)
                hi = in_refs[s + 1][...].astype(jnp.float32)
                s += 2
            else:
                c_lo, c_hi = spec
                lo = p + jnp.float32(c_lo) * u      # derived in-kernel, no HBM stream
                hi = p + jnp.float32(c_hi) * u
            inb = jnp.logical_and(t >= lo, t <= hi)
            out_ref[5 + k] += vsum(inb.astype(jnp.float32))

    return kernel


# ---------------------------------------------------------------------------
# Loss computation (kernel over the aligned main region + tiny JAX tail)
# ---------------------------------------------------------------------------
def _calibration_loss(pred, true, unc, interval_entries, targets):
    n_total = int(pred.size)
    n_int = len(interval_entries)
    n_stats = 5 + n_int

    # --- assemble streams (native dtype; cast happens inside the kernel) ---
    flat = [jnp.ravel(pred), jnp.ravel(true), jnp.ravel(unc)]
    iv_specs = []
    for kind, a, b in interval_entries:
        if kind == "array":
            flat.append(jnp.ravel(a))
            flat.append(jnp.ravel(b))
            iv_specs.append(None)
        else:
            iv_specs.append((float(a), float(b)))
    n_streams = len(flat)

    # --- block planning -----------------------------------------------------
    rows_all = n_total // _LANES
    vmem_limit = _vmem_limit_bytes()
    bytes_per_row = sum(jnp.dtype(f.dtype).itemsize for f in flat) * _LANES * 2  # dbl-buffered
    input_budget = (vmem_limit * 3) // 5      # headroom for Mosaic temporaries
    max_rows = min(_MAX_BLOCK_ROWS,
                   max(_ROW_ALIGN, (input_budget // bytes_per_row) // _ROW_ALIGN * _ROW_ALIGN))

    if rows_all >= _ROW_ALIGN:
        n_tiles = -(-rows_all // max_rows)                       # ceil
        block_rows = max(_ROW_ALIGN,
                         min(max_rows, (rows_all // n_tiles) // _ROW_ALIGN * _ROW_ALIGN))
        n_blocks = rows_all // block_rows
    else:
        block_rows, n_blocks = 0, 0

    num_chunks = 1
    if n_blocks >= 2 and _num_tensorcores() >= 2:
        num_chunks = 2                        # real per-TC split (v7x / megacore)
        if n_blocks % 2:
            n_blocks -= 1                     # keep split unconditional; odd block -> JAX tail

    n_main = n_blocks * block_rows * _LANES

    # --- fused streaming kernel over the aligned main region ----------------
    slab = None
    if n_blocks > 0:
        if rows_all * _LANES == n_total:
            views = [f.reshape(rows_all, _LANES) for f in flat]          # zero-copy views
        else:
            rows_main = n_blocks * block_rows
            views = [f[: rows_main * _LANES].reshape(rows_main, _LANES) for f in flat]

        bpc = n_blocks // num_chunks
        kernel = _make_fused_kernel(iv_specs, block_rows // _SUBLANES, n_streams)
        idx_map = lambda c, i: (c * bpc + i, 0)  # noqa: E731

        if num_chunks > 1:
            semantics = (pltpu.CORE_PARALLEL, pltpu.ARBITRARY)
        else:
            semantics = ("arbitrary", "arbitrary")

        bytes_accessed = sum(n_main * jnp.dtype(f.dtype).itemsize for f in flat) \
            + num_chunks * n_stats * _SUBLANES * _LANES * 4
        cost = pl.CostEstimate(flops=int((12 + 6 * n_int) * n_main),
                               transcendentals=0,
                               bytes_accessed=int(bytes_accessed))

        out = pl.pallas_call(
            kernel,
            out_shape=jax.ShapeDtypeStruct((num_chunks * n_stats, _SUBLANES, _LANES),
                                           jnp.float32),
            grid=(num_chunks, bpc),
            in_specs=[pl.BlockSpec((block_rows, _LANES), idx_map)] * n_streams,
            out_specs=pl.BlockSpec((n_stats, _SUBLANES, _LANES), lambda c, i: (c, 0, 0)),
            compiler_params=pltpu.CompilerParams(
                dimension_semantics=semantics,
                vmem_limit_bytes=vmem_limit),
            cost_estimate=cost,
        )(*views)
        # (num_chunks, n_stats, 8, 128) -> (n_stats, 8, 128)
        slab = jnp.sum(out.reshape(num_chunks, n_stats, _SUBLANES, _LANES), axis=0)

    # --- sub-block / ragged tail in plain JAX (tiny) -------------------------
    n_tail = n_total - n_main
    tail_mom = None
    tail_cov = [jnp.float32(0.0)] * n_int
    if n_tail > 0:
        tp = flat[0][n_main:].astype(jnp.float32)
        tt = flat[1][n_main:].astype(jnp.float32)
        tu = flat[2][n_main:].astype(jnp.float32)
        te = jnp.abs(tp - tt)
        tail_mom = (jnp.sum(te), jnp.sum(te * te), jnp.sum(tu),
                    jnp.sum(tu * tu), jnp.sum(te * tu))
        tail_cov = []
        s = 3
        for spec in iv_specs:
            if spec is None:
                lo = flat[s][n_main:].astype(jnp.float32)
                hi = flat[s + 1][n_main:].astype(jnp.float32)
                s += 2
            else:
                lo = tp + jnp.float32(spec[0]) * tu
                hi = tp + jnp.float32(spec[1]) * tu
            tail_cov.append(jnp.sum(((tt >= lo) & (tt <= hi)).astype(jnp.float32)))

    # --- combine slab slots (+ tail group) with a pooled decomposition ------
    # Each of the 1024 slab slots holds exactly n_main/1024 elements, so the
    # variance / covariance can be combined group-wise, which is far more
    # stable than the single global  sum_sq - n*mean^2  subtraction.
    p_Se, p_Qe, p_Su, p_Qu, p_C, p_n = [], [], [], [], [], []
    if slab is not None:
        per_slot = float(n_main) / float(_SUBLANES * _LANES)
        p_Se.append(slab[0].reshape(-1))
        p_Qe.append(slab[1].reshape(-1))
        p_Su.append(slab[2].reshape(-1))
        p_Qu.append(slab[3].reshape(-1))
        p_C.append(slab[4].reshape(-1))
        p_n.append(jnp.full((_SUBLANES * _LANES,), per_slot, jnp.float32))
    if tail_mom is not None:
        ts_e, tq_e, ts_u, tq_u, tc = tail_mom
        p_Se.append(ts_e.reshape(1))
        p_Qe.append(tq_e.reshape(1))
        p_Su.append(ts_u.reshape(1))
        p_Qu.append(tq_u.reshape(1))
        p_C.append(tc.reshape(1))
        p_n.append(jnp.full((1,), float(n_tail), jnp.float32))

    S_e = jnp.concatenate(p_Se)
    Q_e = jnp.concatenate(p_Qe)
    S_u = jnp.concatenate(p_Su)
    Q_u = jnp.concatenate(p_Qu)
    C_eu = jnp.concatenate(p_C)
    cnt = jnp.concatenate(p_n)

    n_f = jnp.float32(n_total)
    eps = jnp.float32(1e-8)
    mean_e = jnp.sum(S_e) / n_f
    mean_u = jnp.sum(S_u) / n_f
    m_e = S_e / cnt
    m_u = S_u / cnt
    ss_e = jnp.sum(Q_e - S_e * m_e) + jnp.sum(cnt * (m_e - mean_e) ** 2)
    ss_u = jnp.sum(Q_u - S_u * m_u) + jnp.sum(cnt * (m_u - mean_u) ** 2)
    sc = jnp.sum(C_eu - S_e * m_u) + jnp.sum(cnt * (m_e - mean_e) * (m_u - mean_u))

    # torch.std default: unbiased (N-1) estimator.
    std_e = jnp.sqrt(jnp.maximum(ss_e, 0.0) / (n_f - 1.0))
    std_u = jnp.sqrt(jnp.maximum(ss_u, 0.0) / (n_f - 1.0))
    correlation = (sc / n_f) / ((std_e + eps) * (std_u + eps))

    losses = [jnp.abs(correlation - 0.5)]
    for k, tgt in enumerate(targets):
        cov_sum = tail_cov[k]
        if slab is not None:
            cov_sum = cov_sum + jnp.sum(slab[5 + k])
        losses.append(jnp.abs(cov_sum / n_f - jnp.float32(tgt)))
    return sum(losses) / len(losses)


# ---------------------------------------------------------------------------
# Public entry point (mirrors UncertaintyCalibrationLoss.forward; the
# calibration_weight argument is unused in the reference forward as well).
# ---------------------------------------------------------------------------
def uncertainty_calibration_loss(pred_result, true, calibration_weight=0.1):
    if not isinstance(pred_result, dict):
        return 0.0
    pred = pred_result.get("prediction")
    unc = pred_result.get("uncertainty")
    conf_intervals = pred_result.get("confidence_intervals", {}) or {}
    if pred is None or unc is None:
        return 0.0

    interval_entries = []
    targets = []
    for name, d in conf_intervals.items():
        if "lower" in d and "upper" in d:
            interval_entries.append(("array", d["lower"], d["upper"]))
        elif "lower_coeff" in d and "upper_coeff" in d:
            # Optional fast path: parametric interval lower/upper =
            # prediction + coeff * uncertainty, derived in-kernel (no extra
            # HBM streams).  Array form above keeps the original semantics.
            interval_entries.append(("affine", float(d["lower_coeff"]),
                                     float(d["upper_coeff"])))
        else:
            continue
        try:
            targets.append(float(name.replace("%", "")) / 100.0)
        except Exception:
            targets.append(0.95)

    return _calibration_loss(pred, true, unc, interval_entries, targets)


# ---------------------------------------------------------------------------
# Pure-JAX reference (mirrors the PyTorch math) for a numerical sanity check
# ---------------------------------------------------------------------------
def _reference_loss(pred_result, true):
    pred = pred_result["prediction"]
    unc = pred_result["uncertainty"]
    e = jnp.abs(pred - true)

    def _std(x):
        return jnp.std(x, ddof=1)

    e_n = (e - jnp.mean(e)) / (_std(e) + 1e-8)
    u_n = (unc - jnp.mean(unc)) / (_std(unc) + 1e-8)
    corr = jnp.mean(e_n * u_n)
    losses = [jnp.abs(corr - 0.5)]
    for name, d in pred_result.get("confidence_intervals", {}).items():
        target = float(name.replace("%", "")) / 100.0
        inb = ((true >= d["lower"]) & (true <= d["upper"])).astype(jnp.float32)
        losses.append(jnp.abs(jnp.mean(inb) - target))
    return sum(losses) / len(losses)


# ---------------------------------------------------------------------------
if __name__ == "__main__":
    key = jax.random.PRNGKey(0)
    k_pred, k_true, k_unc = jax.random.split(key, 3)

    shape = (2, 4, 16, 16)  # [B, C, H, W]
    pred = jax.random.normal(k_pred, shape, dtype=jnp.float32)
    true = pred + 0.3 * jax.random.normal(k_true, shape, dtype=jnp.float32)
    uncertainty = jnp.abs(jax.random.normal(k_unc, shape, dtype=jnp.float32)) * 0.3

    pred_result = {
        "prediction": pred,
        "uncertainty": uncertainty,
        "confidence_intervals": {
            "95%": {"lower": pred - 2.0 * uncertainty,
                    "upper": pred + 2.0 * uncertainty},
            "68%": {"lower": pred - 1.0 * uncertainty,
                    "upper": pred + 1.0 * uncertainty},
        },
    }

    loss = jax.block_until_ready(uncertainty_calibration_loss(pred_result, true))
    ref = jax.block_until_ready(_reference_loss(pred_result, true))
    assert abs(float(loss) - float(ref)) < 1e-4, (float(loss), float(ref))

    # Affine fast path: same intervals expressed as prediction + c*uncertainty,
    # derived in-kernel so only 3 arrays are streamed from HBM.
    pred_result_affine = {
        "prediction": pred,
        "uncertainty": uncertainty,
        "confidence_intervals": {
            "95%": {"lower_coeff": -2.0, "upper_coeff": 2.0},
            "68%": {"lower_coeff": -1.0, "upper_coeff": 1.0},
        },
    }
    loss_affine = jax.block_until_ready(
        uncertainty_calibration_loss(pred_result_affine, true))
    assert abs(float(loss_affine) - float(ref)) < 1e-4, (float(loss_affine), float(ref))

    print("KERNEL_OK")
</pallas_src>

<mosaic_0001>
module attributes {stable_mosaic.version = 11 : i64} {
  func.func @kernel(%arg0: i32, %arg1: i32, %arg2: memref<16x128xf32, #tpu.memory_space<vmem>>, %arg3: memref<16x128xf32, #tpu.memory_space<vmem>>, %arg4: memref<16x128xf32, #tpu.memory_space<vmem>>, %arg5: memref<16x128xf32, #tpu.memory_space<vmem>>, %arg6: memref<16x128xf32, #tpu.memory_space<vmem>>, %arg7: memref<16x128xf32, #tpu.memory_space<vmem>>, %arg8: memref<16x128xf32, #tpu.memory_space<vmem>>, %arg9: memref<7x8x128xf32, #tpu.memory_space<vmem>>) attributes {dimension_semantics = [#tpu.dimension_semantics<arbitrary>, #tpu.dimension_semantics<arbitrary>], iteration_bounds = array<i64: 1, 1>, scalar_prefetch = 0 : i64, scratch_operands = 0 : i64, tpu.core_type = #tpu.core_type<tc>, window_params = [{transform_indices = @transform_0, window_bounds = array<i64: 16, 128>}, {transform_indices = @transform_1, window_bounds = array<i64: 16, 128>}, {transform_indices = @transform_2, window_bounds = array<i64: 16, 128>}, {transform_indices = @transform_3, window_bounds = array<i64: 16, 128>}, {transform_indices = @transform_4, window_bounds = array<i64: 16, 128>}, {transform_indices = @transform_5, window_bounds = array<i64: 16, 128>}, {transform_indices = @transform_6, window_bounds = array<i64: 16, 128>}, {transform_indices = @transform_7, window_bounds = array<i64: 7, 8, 128>}]} {
    %c0_i32 = arith.constant 0 : i32
    %0 = arith.cmpi eq, %arg1, %c0_i32 : i32
    %1 = arith.extui %0 : i1 to i32
    %c0_i32_0 = arith.constant 0 : i32
    %2 = arith.cmpi ne, %1, %c0_i32_0 : i32
    scf.if %2 {
      %cst_56 = arith.constant 0.000000e+00 : f32
      %81 = vector.broadcast %cst_56 : f32 to vector<7x8x128xf32>
      %c0_57 = arith.constant 0 : index
      %c0_58 = arith.constant 0 : index
      %c0_59 = arith.constant 0 : index
      %82 = vector.load %arg9[%c0_57, %c0_58, %c0_59] : memref<7x8x128xf32, #tpu.memory_space<vmem>>, vector<7x8x128xf32>
      tpu.vector_store %arg9[%c0_57, %c0_58, %c0_59], %81 {strides = array<i32>} : memref<7x8x128xf32, #tpu.memory_space<vmem>>, vector<7x8x128xf32>,
    } else {
    }
    %c0 = arith.constant 0 : index
    %c0_1 = arith.constant 0 : index
    %3 = vector.load %arg2[%c0, %c0_1] : memref<16x128xf32, #tpu.memory_space<vmem>>, vector<16x128xf32>
    %c0_2 = arith.constant 0 : index
    %c0_3 = arith.constant 0 : index
    %4 = vector.load %arg3[%c0_2, %c0_3] : memref<16x128xf32, #tpu.memory_space<vmem>>, vector<16x128xf32>
    %c0_4 = arith.constant 0 : index
    %c0_5 = arith.constant 0 : index
    %5 = vector.load %arg4[%c0_4, %c0_5] : memref<16x128xf32, #tpu.memory_space<vmem>>, vector<16x128xf32>
    %6 = arith.subf %3, %4 : vector<16x128xf32>
    %7 = math.absf %6 : vector<16x128xf32>
    %c0_6 = arith.constant 0 : index
    %c0_7 = arith.constant 0 : index
    %c0_8 = arith.constant 0 : index
    %8 = vector.load %arg9[%c0_6, %c0_7, %c0_8] : memref<7x8x128xf32, #tpu.memory_space<vmem>>, vector<1x8x128xf32>
    %9 = vector.shape_cast %8 : vector<1x8x128xf32> to vector<8x128xf32>
    %10 = vector.shape_cast %7 : vector<16x128xf32> to vector<2x8x128xf32>
    %cst = arith.constant dense<0.000000e+00> : vector<8x128xf32>
    %11 = vector.multi_reduction <add>, %10, %cst [0] : vector<2x8x128xf32> to vector<8x128xf32>
    %12 = arith.addf %9, %11 : vector<8x128xf32>
    %c0_9 = arith.constant 0 : index
    %c0_10 = arith.constant 0 : index
    %c0_11 = arith.constant 0 : index
    %13 = vector.load %arg9[%c0_9, %c0_10, %c0_11] : memref<7x8x128xf32, #tpu.memory_space<vmem>>, vector<1x8x128xf32>
    %14 = vector.shape_cast %13 : vector<1x8x128xf32> to vector<8x128xf32>
    %15 = vector.shape_cast %12 : vector<8x128xf32> to vector<1x8x128xf32>
    tpu.vector_store %arg9[%c0_9, %c0_10, %c0_11], %15 {strides = array<i32>} : memref<7x8x128xf32, #tpu.memory_space<vmem>>, vector<1x8x128xf32>,
    %c1 = arith.constant 1 : index
    %c0_12 = arith.constant 0 : index
    %c0_13 = arith.constant 0 : index
    %16 = vector.load %arg9[%c1, %c0_12, %c0_13] : memref<7x8x128xf32, #tpu.memory_space<vmem>>, vector<1x8x128xf32>
    %17 = vector.shape_cast %16 : vector<1x8x128xf32> to vector<8x128xf32>
    %18 = arith.mulf %7, %7 : vector<16x128xf32>
    %19 = vector.shape_cast %18 : vector<16x128xf32> to vector<2x8x128xf32>
    %cst_14 = arith.constant dense<0.000000e+00> : vector<8x128xf32>
    %20 = vector.multi_reduction <add>, %19, %cst_14 [0] : vector<2x8x128xf32> to vector<8x128xf32>
    %21 = arith.addf %17, %20 : vector<8x128xf32>
    %c1_15 = arith.constant 1 : index
    %c0_16 = arith.constant 0 : index
    %c0_17 = arith.constant 0 : index
    %22 = vector.load %arg9[%c1_15, %c0_16, %c0_17] : memref<7x8x128xf32, #tpu.memory_space<vmem>>, vector<1x8x128xf32>
    %23 = vector.shape_cast %22 : vector<1x8x128xf32> to vector<8x128xf32>
    %24 = vector.shape_cast %21 : vector<8x128xf32> to vector<1x8x128xf32>
    tpu.vector_store %arg9[%c1_15, %c0_16, %c0_17], %24 {strides = array<i32>} : memref<7x8x128xf32, #tpu.memory_space<vmem>>, vector<1x8x128xf32>,
    %c2 = arith.constant 2 : index
    %c0_18 = arith.constant 0 : index
    %c0_19 = arith.constant 0 : index
    %25 = vector.load %arg9[%c2, %c0_18, %c0_19] : memref<7x8x128xf32, #tpu.memory_space<vmem>>, vector<1x8x128xf32>
    %26 = vector.shape_cast %25 : vector<1x8x128xf32> to vector<8x128xf32>
    %27 = vector.shape_cast %5 : vector<16x128xf32> to vector<2x8x128xf32>
    %cst_20 = arith.constant dense<0.000000e+00> : vector<8x128xf32>
    %28 = vector.multi_reduction <add>, %27, %cst_20 [0] : vector<2x8x128xf32> to vector<8x128xf32>
    %29 = arith.addf %26, %28 : vector<8x128xf32>
    %c2_21 = arith.constant 2 : index
    %c0_22 = arith.constant 0 : index
    %c0_23 = arith.constant 0 : index
    %30 = vector.load %arg9[%c2_21, %c0_22, %c0_23] : memref<7x8x128xf32, #tpu.memory_space<vmem>>, vector<1x8x128xf32>
    %31 = vector.shape_cast %30 : vector<1x8x128xf32> to vector<8x128xf32>
    %32 = vector.shape_cast %29 : vector<8x128xf32> to vector<1x8x128xf32>
    tpu.vector_store %arg9[%c2_21, %c0_22, %c0_23], %32 {strides = array<i32>} : memref<7x8x128xf32, #tpu.memory_space<vmem>>, vector<1x8x128xf32>,
    %c3 = arith.constant 3 : index
    %c0_24 = arith.constant 0 : index
    %c0_25 = arith.constant 0 : index
    %33 = vector.load %arg9[%c3, %c0_24, %c0_25] : memref<7x8x128xf32, #tpu.memory_space<vmem>>, vector<1x8x128xf32>
    %34 = vector.shape_cast %33 : vector<1x8x128xf32> to vector<8x128xf32>
    %35 = arith.mulf %5, %5 : vector<16x128xf32>
    %36 = vector.shape_cast %35 : vector<16x128xf32> to vector<2x8x128xf32>
    %cst_26 = arith.constant dense<0.000000e+00> : vector<8x128xf32>
    %37 = vector.multi_reduction <add>, %36, %cst_26 [0] : vector<2x8x128xf32> to vector<8x128xf32>
    %38 = arith.addf %34, %37 : vector<8x128xf32>
    %c3_27 = arith.constant 3 : index
    %c0_28 = arith.constant 0 : index
    %c0_29 = arith.constant 0 : index
    %39 = vector.load %arg9[%c3_27, %c0_28, %c0_29] : memref<7x8x128xf32, #tpu.memory_space<vmem>>, vector<1x8x128xf32>
    %40 = vector.shape_cast %39 : vector<1x8x128xf32> to vector<8x128xf32>
    %41 = vector.shape_cast %38 : vector<8x128xf32> to vector<1x8x128xf32>
    tpu.vector_store %arg9[%c3_27, %c0_28, %c0_29], %41 {strides = array<i32>} : memref<7x8x128xf32, #tpu.memory_space<vmem>>, vector<1x8x128xf32>,
    %c4 = arith.constant 4 : index
    %c0_30 = arith.constant 0 : index
    %c0_31 = arith.constant 0 : index
    %42 = vector.load %arg9[%c4, %c0_30, %c0_31] : memref<7x8x128xf32, #tpu.memory_space<vmem>>, vector<1x8x128xf32>
    %43 = vector.shape_cast %42 : vector<1x8x128xf32> to vector<8x128xf32>
    %44 = arith.mulf %7, %5 : vector<16x128xf32>
    %45 = vector.shape_cast %44 : vector<16x128xf32> to vector<2x8x128xf32>
    %cst_32 = arith.constant dense<0.000000e+00> : vector<8x128xf32>
    %46 = vector.multi_reduction <add>, %45, %cst_32 [0] : vector<2x8x128xf32> to vector<8x128xf32>
    %47 = arith.addf %43, %46 : vector<8x128xf32>
    %c4_33 = arith.constant 4 : index
    %c0_34 = arith.constant 0 : index
    %c0_35 = arith.constant 0 : index
    %48 = vector.load %arg9[%c4_33, %c0_34, %c0_35] : memref<7x8x128xf32, #tpu.memory_space<vmem>>, vector<1x8x128xf32>
    %49 = vector.shape_cast %48 : vector<1x8x128xf32> to vector<8x128xf32>
    %50 = vector.shape_cast %47 : vector<8x128xf32> to vector<1x8x128xf32>
    tpu.vector_store %arg9[%c4_33, %c0_34, %c0_35], %50 {strides = array<i32>} : memref<7x8x128xf32, #tpu.memory_space<vmem>>, vector<1x8x128xf32>,
    %c0_36 = arith.constant 0 : index
    %c0_37 = arith.constant 0 : index
    %51 = vector.load %arg5[%c0_36, %c0_37] : memref<16x128xf32, #tpu.memory_space<vmem>>, vector<16x128xf32>
    %c0_38 = arith.constant 0 : index
    %c0_39 = arith.constant 0 : index
    %52 = vector.load %arg6[%c0_38, %c0_39] : memref<16x128xf32, #tpu.memory_space<vmem>>, vector<16x128xf32>
    %53 = arith.cmpf oge, %4, %51 : vector<16x128xf32>
    %54 = arith.cmpf ole, %4, %52 : vector<16x128xf32>
    %55 = arith.andi %53, %54 : vector<16x128xi1>
    %c5 = arith.constant 5 : index
    %c0_40 = arith.constant 0 : index
    %c0_41 = arith.constant 0 : index
    %56 = vector.load %arg9[%c5, %c0_40, %c0_41] : memref<7x8x128xf32, #tpu.memory_space<vmem>>, vector<1x8x128xf32>
    %57 = vector.shape_cast %56 : vector<1x8x128xf32> to vector<8x128xf32>
    %58 = arith.extui %55 : vector<16x128xi1> to vector<16x128xi32>
    %59 = arith.sitofp %58 : vector<16x128xi32> to vector<16x128xf32>
    %60 = vector.shape_cast %59 : vector<16x128xf32> to vector<2x8x128xf32>
    %cst_42 = arith.constant dense<0.000000e+00> : vector<8x128xf32>
    %61 = vector.multi_reduction <add>, %60, %cst_42 [0] : vector<2x8x128xf32> to vector<8x128xf32>
    %62 = arith.addf %57, %61 : vector<8x128xf32>
    %c5_43 = arith.constant 5 : index
    %c0_44 = arith.constant 0 : index
    %c0_45 = arith.constant 0 : index
    %63 = vector.load %arg9[%c5_43, %c0_44, %c0_45] : memref<7x8x128xf32, #tpu.memory_space<vmem>>, vector<1x8x128xf32>
    %64 = vector.shape_cast %63 : vector<1x8x128xf32> to vector<8x128xf32>
    %65 = vector.shape_cast %62 : vector<8x128xf32> to vector<1x8x128xf32>
    tpu.vector_store %arg9[%c5_43, %c0_44, %c0_45], %65 {strides = array<i32>} : memref<7x8x128xf32, #tpu.memory_space<vmem>>, vector<1x8x128xf32>,
    %c0_46 = arith.constant 0 : index
    %c0_47 = arith.constant 0 : index
    %66 = vector.load %arg7[%c0_46, %c0_47] : memref<16x128xf32, #tpu.memory_space<vmem>>, vector<16x128xf32>
    %c0_48 = arith.constant 0 : index
    %c0_49 = arith.constant 0 : index
    %67 = vector.load %arg8[%c0_48, %c0_49] : memref<16x128xf32, #tpu.memory_space<vmem>>, vector<16x128xf32>
    %68 = arith.cmpf oge, %4, %66 : vector<16x128xf32>
    %69 = arith.cmpf ole, %4, %67 : vector<16x128xf32>
    %70 = arith.andi %68, %69 : vector<16x128xi1>
    %c6 = arith.constant 6 : index
    %c0_50 = arith.constant 0 : index
    %c0_51 = arith.constant 0 : index
    %71 = vector.load %arg9[%c6, %c0_50, %c0_51] : memref<7x8x128xf32, #tpu.memory_space<vmem>>, vector<1x8x128xf32>
    %72 = vector.shape_cast %71 : vector<1x8x128xf32> to vector<8x128xf32>
    %73 = arith.extui %70 : vector<16x128xi1> to vector<16x128xi32>
    %74 = arith.sitofp %73 : vector<16x128xi32> to vector<16x128xf32>
    %75 = vector.shape_cast %74 : vector<16x128xf32> to vector<2x8x128xf32>
    %cst_52 = arith.constant dense<0.000000e+00> : vector<8x128xf32>
    %76 = vector.multi_reduction <add>, %75, %cst_52 [0] : vector<2x8x128xf32> to vector<8x128xf32>
    %77 = arith.addf %72, %76 : vector<8x128xf32>
    %c6_53 = arith.constant 6 : index
    %c0_54 = arith.constant 0 : index
    %c0_55 = arith.constant 0 : index
    %78 = vector.load %arg9[%c6_53, %c0_54, %c0_55] : memref<7x8x128xf32, #tpu.memory_space<vmem>>, vector<1x8x128xf32>
    %79 = vector.shape_cast %78 : vector<1x8x128xf32> to vector<8x128xf32>
    %80 = vector.shape_cast %77 : vector<8x128xf32> to vector<1x8x128xf32>
    tpu.vector_store %arg9[%c6_53, %c0_54, %c0_55], %80 {strides = array<i32>} : memref<7x8x128xf32, #tpu.memory_space<vmem>>, vector<1x8x128xf32>,
    return
  }
  func.func @transform_0(%arg0: i32, %arg1: i32) -> (i32, i32) {
    %c1_i32 = arith.constant 1 : i32
    %0 = arith.muli %arg0, %c1_i32 : i32
    %1 = arith.addi %0, %arg1 : i32
    %c0_i32 = arith.constant 0 : i32
    %c0_i32_0 = arith.constant 0 : i32
    return %1, %c0_i32 : i32, i32
  }
  func.func @transform_1(%arg0: i32, %arg1: i32) -> (i32, i32) {
    %c1_i32 = arith.constant 1 : i32
    %0 = arith.muli %arg0, %c1_i32 : i32
    %1 = arith.addi %0, %arg1 : i32
    %c0_i32 = arith.constant 0 : i32
    %c0_i32_0 = arith.constant 0 : i32
    return %1, %c0_i32 : i32, i32
  }
  func.func @transform_2(%arg0: i32, %arg1: i32) -> (i32, i32) {
    %c1_i32 = arith.constant 1 : i32
    %0 = arith.muli %arg0, %c1_i32 : i32
    %1 = arith.addi %0, %arg1 : i32
    %c0_i32 = arith.constant 0 : i32
    %c0_i32_0 = arith.constant 0 : i32
    return %1, %c0_i32 : i32, i32
  }
  func.func @transform_3(%arg0: i32, %arg1: i32) -> (i32, i32) {
    %c1_i32 = arith.constant 1 : i32
    %0 = arith.muli %arg0, %c1_i32 : i32
    %1 = arith.addi %0, %arg1 : i32
    %c0_i32 = arith.constant 0 : i32
    %c0_i32_0 = arith.constant 0 : i32
    return %1, %c0_i32 : i32, i32
  }
  func.func @transform_4(%arg0: i32, %arg1: i32) -> (i32, i32) {
    %c1_i32 = arith.constant 1 : i32
    %0 = arith.muli %arg0, %c1_i32 : i32
    %1 = arith.addi %0, %arg1 : i32
    %c0_i32 = arith.constant 0 : i32
    %c0_i32_0 = arith.constant 0 : i32
    return %1, %c0_i32 : i32, i32
  }
  func.func @transform_5(%arg0: i32, %arg1: i32) -> (i32, i32) {
    %c1_i32 = arith.constant 1 : i32
    %0 = arith.muli %arg0, %c1_i32 : i32
    %1 = arith.addi %0, %arg1 : i32
    %c0_i32 = arith.constant 0 : i32
    %c0_i32_0 = arith.constant 0 : i32
    return %1, %c0_i32 : i32, i32
  }
  func.func @transform_6(%arg0: i32, %arg1: i32) -> (i32, i32) {
    %c1_i32 = arith.constant 1 : i32
    %0 = arith.muli %arg0, %c1_i32 : i32
    %1 = arith.addi %0, %arg1 : i32
    %c0_i32 = arith.constant 0 : i32
    %c0_i32_0 = arith.constant 0 : i32
    return %1, %c0_i32 : i32, i32
  }
  func.func @transform_7(%arg0: i32, %arg1: i32) -> (i32, i32, i32) {
    %c0_i32 = arith.constant 0 : i32
    %c0_i32_0 = arith.constant 0 : i32
    %c0_i32_1 = arith.constant 0 : i32
    return %arg0, %c0_i32, %c0_i32_0 : i32, i32, i32
  }
}

</mosaic_0001>

<llo_original>
// kernel: tpu_custom_call.1
$region0: #{tpu_custom_call.1}
  #allocation0 [shape = 'u32[]', space=smem, size = 0x4, offset = 0x4, fixed_abs, tag = 'smem constant byte address 0x4 - core index']
  #allocation1 [shape = 'u32[72,128]{1,0:T(1,128)}', space=vmem, size = 0x9000, scoped, tag = 'internal scratch']
  %s0 = inlined_call_operand.hbm [shape: f32[16,128], index: 0, kind: input, shape index: {}]
  %s1 = inlined_call_operand.hbm [shape: f32[16,128], index: 1, kind: input, shape index: {}]
  %s2 = inlined_call_operand.hbm [shape: f32[16,128], index: 2, kind: input, shape index: {}]
  %s3 = inlined_call_operand.hbm [shape: f32[16,128], index: 3, kind: input, shape index: {}]
  %s4 = inlined_call_operand.hbm [shape: f32[16,128], index: 4, kind: input, shape index: {}]
  %s5 = inlined_call_operand.hbm [shape: f32[16,128], index: 5, kind: input, shape index: {}]
  %s6 = inlined_call_operand.hbm [shape: f32[16,128], index: 6, kind: input, shape index: {}]
  %s7 = inlined_call_operand.hbm [shape: f32[7,8,128], index: 7, kind: output, shape index: {}]
  %s8 = sld [smem:[#allocation0]]
  $region70: #{tpu_custom_call.1} parent=0
    _
  %s10 = ssub.s32 1, %s8
  %s11 = scalar_select 0, %s10, %s8
  $region1: #{tpu_custom_call.1} parent=0
    #allocation2 [shape = 'u8[8192]{0}', space=vmem, size = 0x2000, scoped, tag = 'input window, operand 0, single buffered']
    #allocation3 [shape = 's32[1]{0}', space=sflag, size = 0x4, scoped, tag = 'scoped memory for tpu_custom_call.1']
    #allocation4 [shape = 's32[1]{0}', space=sflag, size = 0x4, scoped, tag = 'scoped memory for tpu_custom_call.1']
    #allocation5 [shape = 'u8[8192]{0}', space=vmem, size = 0x2000, scoped, tag = 'input window, operand 1, single buffered']
    #allocation6 [shape = 's32[1]{0}', space=sflag, size = 0x4, scoped, tag = 'scoped memory for tpu_custom_call.1']
    #allocation7 [shape = 'u8[8192]{0}', space=vmem, size = 0x2000, scoped, tag = 'input window, operand 2, single buffered']
    #allocation8 [shape = 'u8[8192]{0}', space=vmem, size = 0x2000, scoped, tag = 'input window, operand 3, single buffered']
    #allocation9 [shape = 's32[1]{0}', space=sflag, size = 0x4, scoped, tag = 'scoped memory for tpu_custom_call.1']
    #allocation10 [shape = 'u8[8192]{0}', space=vmem, size = 0x2000, scoped, tag = 'input window, operand 4, single buffered']
    #allocation11 [shape = 'u8[8192]{0}', space=vmem, size = 0x2000, scoped, tag = 'input window, operand 5, single buffered']
    #allocation12 [shape = 's32[1]{0}', space=sflag, size = 0x4, scoped, tag = 'scoped memory for tpu_custom_call.1']
    #allocation13 [shape = 'u8[8192]{0}', space=vmem, size = 0x2000, scoped, tag = 'input window, operand 6, single buffered']
    #allocation14 [shape = 'u8[28672]{0}', space=vmem, size = 0x7000, scoped, tag = 'output window, operand 0, single buffered']
    %12 = vsyncpa [#allocation3], 0
    %13 = vsyncpa [#allocation6], 0
    %14 = vsyncpa [#allocation9], 0
    %15 = vsyncpa [#allocation12], 0
    %16 = vsyncpa [#allocation4], 0
    // Predicated region
    $region2: #{tpu_custom_call.1} parent=1 // pred_check
      _
    $region3: #{tpu_custom_call.1} parent=1 // pred_check_branch
      %18 = sbr.rel (0) target = $region5
    $region4: #{tpu_custom_call.1} parent=1 // pred_region
      %s19 = sadd.s32 0, 0
      %s20 = smul.u32 2, %s19
      %22 = vsyncadd [#allocation3], 0
      %s23 = smul.addr %s20, 8
      %s24 = scalar_lea.hbm %s0, %s23
      %s25 = sshll.u32 %s24, 4
      %s26 = int_to_ptr.hbm [resolvable:$true] %s25
      %s27 = sshll.u32 [#allocation2], 4
      %s28 = int_to_ptr.vmem [resolvable:$true] %s27
      %33 = dma.hbm_to_vmem [thread:$0]  %s26, 256, %s28, [#allocation3], 128, 128, 8
    $region5: #{tpu_custom_call.1} parent=1 // pred_fallthru
      _
    // Predicated region
    $region6: #{tpu_custom_call.1} parent=1 // pred_check
      _
    $region7: #{tpu_custom_call.1} parent=1 // pred_check_branch
      %35 = sbr.rel (0) target = $region9
    $region8: #{tpu_custom_call.1} parent=1 // pred_region
      %s36 = sadd.s32 0, 0
      %s37 = smul.u32 2, %s36
      %39 = vsyncadd [#allocation6], 0
      %s40 = smul.addr %s37, 8
      %s41 = scalar_lea.hbm %s1, %s40
      %s42 = sshll.u32 %s41, 4
      %s43 = int_to_ptr.hbm [resolvable:$true] %s42
      %s44 = sshll.u32 [#allocation5], 4
      %s45 = int_to_ptr.vmem [resolvable:$true] %s44
      %50 = dma.hbm_to_vmem [thread:$0]  %s43, 256, %s45, [#allocation6], 128, 128, 8
    $region9: #{tpu_custom_call.1} parent=1 // pred_fallthru
      _
    // Predicated region
    $region10: #{tpu_custom_call.1} parent=1 // pred_check
      _
    $region11: #{tpu_custom_call.1} parent=1 // pred_check_branch
      %52 = sbr.rel (0) target = $region13
    $region12: #{tpu_custom_call.1} parent=1 // pred_region
      %s53 = sadd.s32 0, 0
      %s54 = smul.u32 2, %s53
      %56 = vsyncadd [#allocation6], 0
      %s57 = smul.addr %s54, 8
      %s58 = scalar_lea.hbm %s2, %s57
      %s59 = sshll.u32 %s58, 4
      %s60 = int_to_ptr.hbm [resolvable:$true] %s59
      %s61 = sshll.u32 [#allocation7], 4
      %s62 = int_to_ptr.vmem [resolvable:$true] %s61
      %67 = dma.hbm_to_vmem [thread:$0]  %s60, 256, %s62, [#allocation6], 128, 128, 8
    $region13: #{tpu_custom_call.1} parent=1 // pred_fallthru
      _
    // Predicated region
    $region14: #{tpu_custom_call.1} parent=1 // pred_check
      _
    $region15: #{tpu_custom_call.1} parent=1 // pred_check_branch
      %69 = sbr.rel (0) target = $region17
    $region16: #{tpu_custom_call.1} parent=1 // pred_region
      %s70 = sadd.s32 0, 0
      %s71 = smul.u32 2, %s70
      %73 = vsyncadd [#allocation9], 0
      %s74 = smul.addr %s71, 8
      %s75 = scalar_lea.hbm %s3, %s74
      %s76 = sshll.u32 %s75, 4
      %s77 = int_to_ptr.hbm [resolvable:$true] %s76
      %s78 = sshll.u32 [#allocation8], 4
      %s79 = int_to_ptr.vmem [resolvable:$true] %s78
      %84 = dma.hbm_to_vmem [thread:$0]  %s77, 256, %s79, [#allocation9], 128, 128, 8
    $region17: #{tpu_custom_call.1} parent=1 // pred_fallthru
      _
    // Predicated region
    $region18: #{tpu_custom_call.1} parent=1 // pred_check
      _
    $region19: #{tpu_custom_call.1} parent=1 // pred_check_branch
      %86 = sbr.rel (0) target = $region21
    $region20: #{tpu_custom_call.1} parent=1 // pred_region
      %s87 = sadd.s32 0, 0
      %s88 = smul.u32 2, %s87
      %90 = vsyncadd [#allocation9], 0
      %s91 = smul.addr %s88, 8
      %s92 = scalar_lea.hbm %s4, %s91
      %s93 = sshll.u32 %s92, 4
      %s94 = int_to_ptr.hbm [resolvable:$true] %s93
      %s95 = sshll.u32 [#allocation10], 4
      %s96 = int_to_ptr.vmem [resolvable:$true] %s95
      %101 = dma.hbm_to_vmem [thread:$0]  %s94, 256, %s96, [#allocation9], 128, 128, 8
    $region21: #{tpu_custom_call.1} parent=1 // pred_fallthru
      _
    // Predicated region
    $region22: #{tpu_custom_call.1} parent=1 // pred_check
      _
    $region23: #{tpu_custom_call.1} parent=1 // pred_check_branch
      %103 = sbr.rel (0) target = $region25
    $region24: #{tpu_custom_call.1} parent=1 // pred_region
      %s104 = sadd.s32 0, 0
      %s105 = smul.u32 2, %s104
      %107 = vsyncadd [#allocation12], 0
      %s108 = smul.addr %s105, 8
      %s109 = scalar_lea.hbm %s5, %s108
      %s110 = sshll.u32 %s109, 4
      %s111 = int_to_ptr.hbm [resolvable:$true] %s110
      %s112 = sshll.u32 [#allocation11], 4
      %s113 = int_to_ptr.vmem [resolvable:$true] %s112
      %118 = dma.hbm_to_vmem [thread:$0]  %s111, 256, %s113, [#allocation12], 128, 128, 8
    $region25: #{tpu_custom_call.1} parent=1 // pred_fallthru
      _
    // Predicated region
    $region26: #{tpu_custom_call.1} parent=1 // pred_check
      _
    $region27: #{tpu_custom_call.1} parent=1 // pred_check_branch
      %120 = sbr.rel (0) target = $region29
    $region28: #{tpu_custom_call.1} parent=1 // pred_region
      %s121 = sadd.s32 0, 0
      %s122 = smul.u32 2, %s121
      %124 = vsyncadd [#allocation12], 0
      %s125 = smul.addr %s122, 8
      %s126 = scalar_lea.hbm %s6, %s125
      %s127 = sshll.u32 %s126, 4
      %s128 = int_to_ptr.hbm [resolvable:$true] %s127
      %s129 = sshll.u32 [#allocation13], 4
      %s130 = int_to_ptr.vmem [resolvable:$true] %s129
      %135 = dma.hbm_to_vmem [thread:$0]  %s128, 256, %s130, [#allocation12], 128, 128, 8
    $region29: #{tpu_custom_call.1} parent=1 // pred_fallthru
      _
    // Predicated region
    $region30: #{tpu_custom_call.1} parent=1 // pred_check
      _
    $region31: #{tpu_custom_call.1} parent=1 // pred_check_branch
      %137 = sbr.rel (0) target = $region33
    $region32: #{tpu_custom_call.1} parent=1 // pred_region
      %139 = dma.done [#allocation3], 256
    $region33: #{tpu_custom_call.1} parent=1 // pred_fallthru
      _
    // Predicated region
    $region34: #{tpu_custom_call.1} parent=1 // pred_check
      _
    $region35: #{tpu_custom_call.1} parent=1 // pred_check_branch
      %141 = sbr.rel (0) target = $region37
    $region36: #{tpu_custom_call.1} parent=1 // pred_region
      %143 = dma.done [#allocation6], 256
    $region37: #{tpu_custom_call.1} parent=1 // pred_fallthru
      _
    // Predicated region
    $region38: #{tpu_custom_call.1} parent=1 // pred_check
      _
    $region39: #{tpu_custom_call.1} parent=1 // pred_check_branch
      %145 = sbr.rel (0) target = $region41
    $region40: #{tpu_custom_call.1} parent=1 // pred_region
      %147 = dma.done [#allocation6], 256
    $region41: #{tpu_custom_call.1} parent=1 // pred_fallthru
      _
    // Predicated region
    $region42: #{tpu_custom_call.1} parent=1 // pred_check
      _
    $region43: #{tpu_custom_call.1} parent=1 // pred_check_branch
      %149 = sbr.rel (0) target = $region45
    $region44: #{tpu_custom_call.1} parent=1 // pred_region
      %151 = dma.done [#allocation9], 256
    $region45: #{tpu_custom_call.1} parent=1 // pred_fallthru
      _
    // Predicated region
    $region46: #{tpu_custom_call.1} parent=1 // pred_check
      _
    $region47: #{tpu_custom_call.1} parent=1 // pred_check_branch
      %153 = sbr.rel (0) target = $region49
    $region48: #{tpu_custom_call.1} parent=1 // pred_region
      %155 = dma.done [#allocation9], 256
    $region49: #{tpu_custom_call.1} parent=1 // pred_fallthru
      _
    // Predicated region
    $region50: #{tpu_custom_call.1} parent=1 // pred_check
      _
    $region51: #{tpu_custom_call.1} parent=1 // pred_check_branch
      %157 = sbr.rel (0) target = $region53
    $region52: #{tpu_custom_call.1} parent=1 // pred_region
      %159 = dma.done [#allocation12], 256
    $region53: #{tpu_custom_call.1} parent=1 // pred_fallthru
      _
    // Predicated region
    $region54: #{tpu_custom_call.1} parent=1 // pred_check
      _
    $region55: #{tpu_custom_call.1} parent=1 // pred_check_branch
      %161 = sbr.rel (0) target = $region57
    $region56: #{tpu_custom_call.1} parent=1 // pred_region
      %163 = dma.done [#allocation12], 256
    $region57: #{tpu_custom_call.1} parent=1 // pred_fallthru
      _
    %s164 = sadd.s32 0, 0
    %s165 = smul.u32 2, %s164
    %s166 = sadd.s32 0, 0
    %s167 = smul.u32 2, %s166
    %s168 = sadd.s32 0, 0
    %s169 = smul.u32 2, %s168
    %s170 = sadd.s32 0, 0
    %s171 = smul.u32 2, %s170
    %s172 = sadd.s32 0, 0
    %s173 = smul.u32 2, %s172
    %s174 = sadd.s32 0, 0
    %s175 = smul.u32 2, %s174
    %s176 = sadd.s32 0, 0
    %s177 = smul.u32 2, %s176
    %p178 = scmp.eq.s32.totalorder 0, 0
    // Predicated region
    $region58: #{tpu_custom_call.1} parent=1 // pred_check
      %p179 = pneg %p178
    $region59: #{tpu_custom_call.1} parent=1 // pred_check_branch
      %181 = sbr.rel (%p179) target = $region61
    $region60: #{tpu_custom_call.1} parent=1 // pred_region
      %182 = vst [vmem:[#allocation14] sm:$0xff] 0.0
      %183 = vst [vmem:[#allocation14 + $0x8] sm:$0xff] 0.0
      %184 = vst [vmem:[#allocation14 + $0x10] sm:$0xff] 0.0
      %185 = vst [vmem:[#allocation14 + $0x18] sm:$0xff] 0.0
      %186 = vst [vmem:[#allocation14 + $0x20] sm:$0xff] 0.0
      %187 = vst [vmem:[#allocation14 + $0x28] sm:$0xff] 0.0
      %188 = vst [vmem:[#allocation14 + $0x30] sm:$0xff] 0.0
    $region61: #{tpu_custom_call.1} parent=1 // pred_fallthru
      _
    %v189 = vld [vmem:[#allocation2] sm:$0xff]
    %v190 = vld [vmem:[#allocation2 + $0x8] sm:$0xff]
    %v191 = vld [vmem:[#allocation5] sm:$0xff]
    %v192 = vld [vmem:[#allocation5 + $0x8] sm:$0xff]
    %v193 = vld [vmem:[#allocation7] sm:$0xff]
    %v194 = vld [vmem:[#allocation7 + $0x8] sm:$0xff]
    %v195 = vsub.f32 %v189, %v191
    %v196 = vsub.f32 %v190, %v192
    %v197 = vand.u32 2147483647, %v195
    %v198 = vand.u32 2147483647, %v196
    %v199 = vld [vmem:[#allocation14] sm:$0xff]
    %v200 = vadd.f32 %v197, %v198
    %v201 = vadd.f32 %v199, %v200
    %202 = vst [vmem:[#allocation14] sm:$0xff] %v201
    %s203 = scalar_lea.vmem [#allocation14], 8
    %v204 = vld [vmem:[%s203] sm:$0xff]
    %v205 = vmul.f32 %v197, %v197
    %v206 = vmul.f32 %v198, %v198
    %v207 = vadd.f32 %v205, %v206
    %v208 = vadd.f32 %v204, %v207
    %209 = vst [vmem:[%s203] sm:$0xff] %v208
    %s210 = scalar_lea.vmem [#allocation14], 16
    %v211 = vld [vmem:[%s210] sm:$0xff]
    %v212 = vadd.f32 %v193, %v194
    %v213 = vadd.f32 %v211, %v212
    %214 = vst [vmem:[%s210] sm:$0xff] %v213
    %s215 = scalar_lea.vmem [#allocation14], 24
    %v216 = vld [vmem:[%s215] sm:$0xff]
    %v217 = vmul.f32 %v193, %v193
    %v218 = vmul.f32 %v194, %v194
    %v219 = vadd.f32 %v217, %v218
    %v220 = vadd.f32 %v216, %v219
    %221 = vst [vmem:[%s215] sm:$0xff] %v220
    %s222 = scalar_lea.vmem [#allocation14], 32
    %v223 = vld [vmem:[%s222] sm:$0xff]
    %v224 = vmul.f32 %v197, %v193
    %v225 = vmul.f32 %v198, %v194
    %v226 = vadd.f32 %v224, %v225
    %v227 = vadd.f32 %v223, %v226
    %228 = vst [vmem:[%s222] sm:$0xff] %v227
    %v229 = vld [vmem:[#allocation8] sm:$0xff]
    %v230 = vld [vmem:[#allocation8 + $0x8] sm:$0xff]
    %v231 = vld [vmem:[#allocation10] sm:$0xff]
    %v232 = vld [vmem:[#allocation10 + $0x8] sm:$0xff]
    %vm233 = vcmp.ge.f32.partialorder %v191, %v229
    %vm234 = vcmp.ge.f32.partialorder %v192, %v230
    %vm235 = vcmp.le.f32.partialorder %v191, %v231
    %vm236 = vcmp.le.f32.partialorder %v192, %v232
    %vm237 = vmand %vm233, %vm235
    %vm238 = vmand %vm234, %vm236
    %s239 = scalar_lea.vmem [#allocation14], 40
    %v240 = vld [vmem:[%s239] sm:$0xff]
    %v241 = vsel %vm237, 1, 0
    %v242 = vsel %vm238, 1, 0
    %v243 = vcvt.s32.f32 %v241
    %v244 = vcvt.s32.f32 %v242
    %v245 = vadd.f32 %v243, %v244
    %v246 = vadd.f32 %v240, %v245
    %247 = vst [vmem:[%s239] sm:$0xff] %v246
    %v248 = vld [vmem:[#allocation11] sm:$0xff]
    %v249 = vld [vmem:[#allocation11 + $0x8] sm:$0xff]
    %v250 = vld [vmem:[#allocation13] sm:$0xff]
    %v251 = vld [vmem:[#allocation13 + $0x8] sm:$0xff]
    %vm252 = vcmp.ge.f32.partialorder %v191, %v248
    %vm253 = vcmp.ge.f32.partialorder %v192, %v249
    %vm254 = vcmp.le.f32.partialorder %v191, %v250
    %vm255 = vcmp.le.f32.partialorder %v192, %v251
    %vm256 = vmand %vm252, %vm254
    %vm257 = vmand %vm253, %vm255
    %s258 = scalar_lea.vmem [#allocation14], 48
    %v259 = vld [vmem:[%s258] sm:$0xff]
    %v260 = vsel %vm256, 1, 0
    %v261 = vsel %vm257, 1, 0
    %v262 = vcvt.s32.f32 %v260
    %v263 = vcvt.s32.f32 %v261
    %v264 = vadd.f32 %v262, %v263
    %v265 = vadd.f32 %v259, %v264
    %266 = vst [vmem:[%s258] sm:$0xff] %v265
    // Predicated region
    $region62: #{tpu_custom_call.1} parent=1 // pred_check
      _
    $region63: #{tpu_custom_call.1} parent=1 // pred_check_branch
      %268 = sbr.rel (0) target = $region65
    $region64: #{tpu_custom_call.1} parent=1 // pred_region
      %270 = vsyncadd [#allocation4], 0
      %s271 = sshll.u32 [#allocation14], 4
      %s272 = int_to_ptr.vmem [resolvable:$true] %s271
      %s273 = sshll.u32 %s7, 4
      %s274 = int_to_ptr.hbm [resolvable:$true] %s273
      %279 = dma.vmem_to_hbm [thread:$0]  %s272, 896, %s274, [#allocation4], 128, 128, 8
    $region65: #{tpu_custom_call.1} parent=1 // pred_fallthru
      _
    // Predicated region
    $region66: #{tpu_custom_call.1} parent=1 // pred_check
      _
    $region67: #{tpu_custom_call.1} parent=1 // pred_check_branch
      %281 = sbr.rel (0) target = $region69
    $region68: #{tpu_custom_call.1} parent=1 // pred_region
      %283 = dma.done [#allocation4], 896
    $region69: #{tpu_custom_call.1} parent=1 // pred_fallthru
      _
    %284 = vsyncpa [#allocation3], 1
    %285 = vsyncpa [#allocation6], 1
    %286 = vsyncpa [#allocation9], 1
    %287 = vsyncpa [#allocation12], 1
    %288 = vsyncpa [#allocation4], 1

</llo_original>
